<compile_context>
chip_gen: v5e
topology: v5e:2x2
jax: 0.10.0
libtpu: 0.0.40
codegen_flags: <defaults>
</compile_context>

<pallas_src>
import functools

import jax
import jax.numpy as jnp
from jax.experimental import pallas as pl
from jax.experimental.pallas import tpu as pltpu


def _round_up(x, m):
    return ((x + m - 1) // m) * m


def _device_config():
    """Per-generation split count / VMEM budget. Defaults are safe everywhere."""
    kind = ""
    try:
        kind = jax.devices()[0].device_kind.lower()
    except Exception:  # no devices / unusual backend: fall through to defaults
        pass
    if "v7" in kind:
        # 2 TensorCores per chip, 64 MiB VMEM per TC.
        return dict(num_splits=2,
                    budget_bytes=12 * 1024 * 1024,
                    vmem_limit=48 * 1024 * 1024)
    # v5e / v6e (single TensorCore, 128 MiB VMEM) and anything unknown.
    return dict(num_splits=1,
                budget_bytes=16 * 1024 * 1024,
                vmem_limit=64 * 1024 * 1024)


def _cw_kernel(logits_ref, targets_ref, out_ref, *,
               batch, tile_b, n_inner, margin, use_mxu_sum):
    """One batch tile of the CW loss.

    logits block: (TB, C) in the input dtype; targets block: (TB, 1) int32.
    out_ref: (8, 128) f32 block per core-split holding the running partial sum.
    """
    p = pl.program_id(0)          # core split ("parallel"; 1 or 2 splits)
    i = pl.program_id(1)          # batch tile within split ("arbitrary" / reduction)

    @pl.when(i == 0)
    def _():
        out_ref[...] = jnp.zeros_like(out_ref)

    logits = logits_ref[...]                       # input dtype, no blanket upcast
    tgt = targets_ref[...]                         # (TB, 1) int32, broadcasts

    cls_idx = jax.lax.broadcasted_iota(jnp.int32, logits.shape, 1)
    is_tgt = cls_idx == tgt                        # boolean one-hot mask

    zero = jnp.zeros((), dtype=logits.dtype)
    neg_big = jnp.full((), -1000.0, dtype=logits.dtype)

    # self_loss = logit at target class.
    self_masked = jnp.where(is_tgt, logits, zero)
    if use_mxu_sum:
        # Offload the per-row sum to the otherwise-idle MXU (ones-vector matmul)
        # so only the max uses an XLU cross-lane reduction per loaded vreg.
        ones = jnp.ones((logits.shape[1], 1), dtype=logits.dtype)
        self_loss = jnp.dot(self_masked, ones, preferred_element_type=jnp.float32)
    else:
        self_loss = jnp.sum(self_masked, axis=1, keepdims=True).astype(jnp.float32)

    # other_loss = max over non-target classes (target column forced to -1000,
    # matching the reference arithmetic).
    other_loss = jnp.max(
        jnp.where(is_tgt, neg_big, logits), axis=1, keepdims=True
    ).astype(jnp.float32)

    per_sample = jnp.maximum(self_loss - other_loss + jnp.float32(margin), 0.0)

    # Mask rows beyond the true batch (ragged boundary blocks and the clamped
    # duplicate tile from the v7x split read unspecified / repeated data).
    tile_idx = p * n_inner + i
    row_idx = tile_idx * tile_b + jax.lax.broadcasted_iota(
        jnp.int32, per_sample.shape, 0
    )
    per_sample = jnp.where(row_idx < batch, per_sample, 0.0)

    # Accumulate the negated partial sum into the resident output block.
    out_ref[...] = out_ref[...] - jnp.sum(per_sample, keepdims=True)


def cw_loss(logits, targets, *, num_classes, margin=50.0, reduce=True,
            max_tile_rows=None):
    """Pallas implementation of CWLoss.forward(logits, targets)."""
    B, C = logits.shape
    assert C == num_classes, "logits last dim must equal num_classes"
    dtype = logits.dtype
    itemsize = jnp.dtype(dtype).itemsize
    targets = targets.astype(jnp.int32).reshape(B, 1)

    cfg = _device_config()

    # Batch-tile size: cap by the VMEM byte budget only, accounting for the
    # lane padding of C up to 128 in VMEM.  No row-count cap.
    bytes_per_row = _round_up(C, 128) * itemsize
    tb = cfg["budget_bytes"] // max(1, bytes_per_row)
    if max_tile_rows is not None:        # test hook to force multi-tile paths
        tb = min(tb, max_tile_rows)
    if tb >= B:
        tb = B                           # single full-dim block (always legal)
    else:
        tb = max(8, (tb // 8) * 8)       # sublane-aligned tile, ragged tail masked

    n_tiles = pl.cdiv(B, tb)
    num_splits = min(cfg["num_splits"], n_tiles)
    n_inner = pl.cdiv(n_tiles, num_splits)
    last_tile = n_tiles - 1

    # Clamp over-coverage tiles (only possible when num_splits > 1 and n_tiles
    # is odd) to the last real tile; their rows are zeroed by the row mask.
    def logit_map(p, i):
        return (jnp.minimum(p * n_inner + i, last_tile), 0)

    def tgt_map(p, i):
        return (jnp.minimum(p * n_inner + i, last_tile), 0)

    kernel = functools.partial(
        _cw_kernel, batch=B, tile_b=tb, n_inner=n_inner,
        margin=float(margin), use_mxu_sum=(C >= 128),
    )

    out = pl.pallas_call(
        kernel,
        out_shape=jax.ShapeDtypeStruct((num_splits * 8, 128), jnp.float32),
        grid=(num_splits, n_inner),
        in_specs=[pl.BlockSpec((tb, C), logit_map),
                  pl.BlockSpec((tb, 1), tgt_map)],
        out_specs=pl.BlockSpec((8, 128), lambda p, i: (p, 0)),
        compiler_params=pltpu.CompilerParams(
            dimension_semantics=("parallel", "arbitrary"),
            vmem_limit_bytes=cfg["vmem_limit"],
        ),
        cost_estimate=pl.CostEstimate(
            flops=5 * B * C,
            transcendentals=0,
            bytes_accessed=B * C * itemsize + B * 4 + num_splits * 8 * 128 * 4,
        ),
    )(logits, targets)

    partials = out.reshape(num_splits, 8, 128)[:, 0, 0]   # one partial per split
    loss = jnp.sum(partials)
    if reduce:
        loss = loss / jnp.float32(B)
    return loss


def cw_loss_ref(logits, targets, *, num_classes, margin=50.0, reduce=True):
    """Pure-JAX reference mirroring the PyTorch semantics."""
    onehot = jax.nn.one_hot(targets, num_classes, dtype=logits.dtype)
    self_loss = jnp.sum(onehot * logits, axis=1)
    other_loss = jnp.max((1 - onehot) * logits - onehot * 1000.0, axis=1)
    loss = -jnp.sum(jnp.maximum(self_loss - other_loss + margin, 0.0))
    if reduce:
        loss = loss / onehot.shape[0]
    return loss


if __name__ == "__main__":
    key = jax.random.PRNGKey(0)
    k1, k2, k3, k4, k5, k6 = jax.random.split(key, 6)

    # Test 1: small class count (C=10 < 128), batch-major, single full block.
    B1, C1 = 8, 10
    logits1 = jax.random.normal(k1, (B1, C1), dtype=jnp.float32) * 5.0
    targets1 = jax.random.randint(k2, (B1,), 0, C1, dtype=jnp.int32)
    out1 = jax.block_until_ready(
        cw_loss(logits1, targets1, num_classes=C1, margin=50.0, reduce=True))
    ref1 = cw_loss_ref(logits1, targets1, num_classes=C1, margin=50.0, reduce=True)
    assert jnp.allclose(out1, ref1, rtol=1e-5, atol=1e-5), (out1, ref1)

    # Test 2: C >= 128 (MXU self-loss path) with a batch not a multiple of 8.
    B2, C2 = 20, 128
    logits2 = jax.random.normal(k3, (B2, C2), dtype=jnp.float32) * 5.0
    targets2 = jax.random.randint(k4, (B2,), 0, C2, dtype=jnp.int32)
    out2 = jax.block_until_ready(
        cw_loss(logits2, targets2, num_classes=C2, margin=50.0, reduce=True))
    ref2 = cw_loss_ref(logits2, targets2, num_classes=C2, margin=50.0, reduce=True)
    assert jnp.allclose(out2, ref2, rtol=1e-5, atol=1e-5), (out2, ref2)

    # Test 3: force a small tile to exercise the multi-tile reduction, the
    # ragged last tile, and (on v7x) the clamped over-coverage tile.
    B3, C3 = 40, 16
    logits3 = jax.random.normal(k5, (B3, C3), dtype=jnp.float32) * 5.0
    targets3 = jax.random.randint(k6, (B3,), 0, C3, dtype=jnp.int32)
    out3 = jax.block_until_ready(
        cw_loss(logits3, targets3, num_classes=C3, margin=50.0, reduce=True,
                max_tile_rows=16))
    ref3 = cw_loss_ref(logits3, targets3, num_classes=C3, margin=50.0, reduce=True)
    assert jnp.allclose(out3, ref3, rtol=1e-5, atol=1e-5), (out3, ref3)

    print("KERNEL_OK")
</pallas_src>

<mosaic_0001>
module attributes {stable_mosaic.version = 11 : i64} {
  func.func @_cw_kernel(%arg0: i32, %arg1: i32, %arg2: memref<8x10xf32, #tpu.memory_space<vmem>>, %arg3: memref<8x1xi32, #tpu.memory_space<vmem>>, %arg4: memref<8x128xf32, #tpu.memory_space<vmem>>) attributes {dimension_semantics = [#tpu.dimension_semantics<parallel>, #tpu.dimension_semantics<arbitrary>], iteration_bounds = array<i64: 1, 1>, scalar_prefetch = 0 : i64, scratch_operands = 0 : i64, tpu.core_type = #tpu.core_type<tc>, window_params = [{transform_indices = @transform_0, window_bounds = array<i64: 8, 10>}, {transform_indices = @transform_1, window_bounds = array<i64: 8, 1>}, {transform_indices = @transform_2, window_bounds = array<i64: 8, 128>}]} {
    %c0_i32 = arith.constant 0 : i32
    %0 = arith.cmpi eq, %arg1, %c0_i32 : i32
    %1 = arith.extui %0 : i1 to i32
    %c0_i32_0 = arith.constant 0 : i32
    %2 = arith.cmpi ne, %1, %c0_i32_0 : i32
    scf.if %2 {
      %cst_16 = arith.constant 0.000000e+00 : f32
      %40 = vector.broadcast %cst_16 : f32 to vector<8x128xf32>
      %c0_17 = arith.constant 0 : index
      %c0_18 = arith.constant 0 : index
      %41 = vector.load %arg4[%c0_17, %c0_18] : memref<8x128xf32, #tpu.memory_space<vmem>>, vector<8x128xf32>
      tpu.vector_store %arg4[%c0_17, %c0_18], %40 {strides = array<i32>} : memref<8x128xf32, #tpu.memory_space<vmem>>, vector<8x128xf32>,
    } else {
    }
    %c0 = arith.constant 0 : index
    %c0_1 = arith.constant 0 : index
    %3 = vector.load %arg2[%c0, %c0_1] : memref<8x10xf32, #tpu.memory_space<vmem>>, vector<8x10xf32>
    %c0_2 = arith.constant 0 : index
    %c0_3 = arith.constant 0 : index
    %4 = vector.load %arg3[%c0_2, %c0_3] : memref<8x1xi32, #tpu.memory_space<vmem>>, vector<8x1xi32>
    %5 = tpu.iota {dimensions = array<i32: 1>} : vector<8x10xi32>
    %6 = vector.broadcast %4 : vector<8x1xi32> to vector<8x10xi32>
    %7 = arith.cmpi eq, %5, %6 : vector<8x10xi32>
    %cst = arith.constant 0.000000e+00 : f32
    %8 = vector.broadcast %cst : f32 to vector<8x10xf32>
    %9 = arith.select %7, %3, %8 : vector<8x10xi1>, vector<8x10xf32>
    %cst_4 = arith.constant dense<0.000000e+00> : vector<8xf32>
    %10 = vector.multi_reduction <add>, %9, %cst_4 [1] : vector<8x10xf32> to vector<8xf32>
    %11 = vector.shape_cast %10 : vector<8xf32> to vector<8x1xf32>
    %cst_5 = arith.constant -1.000000e+03 : f32
    %12 = vector.broadcast %cst_5 : f32 to vector<8x10xf32>
    %13 = arith.select %7, %12, %3 : vector<8x10xi1>, vector<8x10xf32>
    %cst_6 = arith.constant dense<0xFF800000> : vector<8xf32>
    %14 = vector.multi_reduction <maximumf>, %13, %cst_6 [1] : vector<8x10xf32> to vector<8xf32>
    %15 = vector.shape_cast %14 : vector<8xf32> to vector<8x1xf32>
    %16 = arith.subf %11, %15 : vector<8x1xf32>
    %cst_7 = arith.constant 5.000000e+01 : f32
    %17 = vector.broadcast %cst_7 : f32 to vector<8x1xf32>
    %18 = arith.addf %16, %17 : vector<8x1xf32>
    %cst_8 = arith.constant 0.000000e+00 : f32
    %19 = vector.broadcast %cst_8 : f32 to vector<8x1xf32>
    %20 = arith.maximumf %18, %19 : vector<8x1xf32>
    %c1_i32 = arith.constant 1 : i32
    %21 = arith.muli %arg0, %c1_i32 : i32
    %22 = arith.addi %21, %arg1 : i32
    %c8_i32 = arith.constant 8 : i32
    %23 = arith.muli %22, %c8_i32 : i32
    %24 = tpu.iota {dimensions = array<i32: 0>} : vector<8x1xi32>
    %25 = vector.broadcast %23 : i32 to vector<8x1xi32>
    %26 = arith.addi %25, %24 : vector<8x1xi32>
    %c8_i32_9 = arith.constant 8 : i32
    %27 = vector.broadcast %c8_i32_9 : i32 to vector<8x1xi32>
    %28 = arith.cmpi slt, %26, %27 : vector<8x1xi32>
    %cst_10 = arith.constant 0.000000e+00 : f32
    %29 = vector.broadcast %cst_10 : f32 to vector<8x1xf32>
    %30 = arith.select %28, %20, %29 : vector<8x1xi1>, vector<8x1xf32>
    %c0_11 = arith.constant 0 : index
    %c0_12 = arith.constant 0 : index
    %31 = vector.load %arg4[%c0_11, %c0_12] : memref<8x128xf32, #tpu.memory_space<vmem>>, vector<8x128xf32>
    %32 = vector.shape_cast %30 : vector<8x1xf32> to vector<1x8x1xf32>
    %cst_13 = arith.constant dense<0.000000e+00> : vector<1xf32>
    %33 = vector.multi_reduction <add>, %32, %cst_13 [1, 2] : vector<1x8x1xf32> to vector<1xf32>
    %34 = vector.shape_cast %33 : vector<1xf32> to vector<1x1x1xf32>
    %35 = vector.extract %34[0, 0, 0] : f32 from vector<1x1x1xf32>
    %36 = vector.broadcast %35 : f32 to vector<1x1xf32>
    %37 = vector.broadcast %36 : vector<1x1xf32> to vector<8x128xf32>
    %38 = arith.subf %31, %37 : vector<8x128xf32>
    %c0_14 = arith.constant 0 : index
    %c0_15 = arith.constant 0 : index
    %39 = vector.load %arg4[%c0_14, %c0_15] : memref<8x128xf32, #tpu.memory_space<vmem>>, vector<8x128xf32>
    tpu.vector_store %arg4[%c0_14, %c0_15], %38 {strides = array<i32>} : memref<8x128xf32, #tpu.memory_space<vmem>>, vector<8x128xf32>,
    return
  }
  func.func @transform_0(%arg0: i32, %arg1: i32) -> (i32, i32) {
    %c1_i32 = arith.constant 1 : i32
    %0 = arith.muli %arg0, %c1_i32 : i32
    %1 = arith.addi %0, %arg1 : i32
    %c0_i32 = arith.constant 0 : i32
    %2 = arith.minsi %1, %c0_i32 : i32
    %c0_i32_0 = arith.constant 0 : i32
    %c0_i32_1 = arith.constant 0 : i32
    return %2, %c0_i32_0 : i32, i32
  }
  func.func @transform_1(%arg0: i32, %arg1: i32) -> (i32, i32) {
    %c1_i32 = arith.constant 1 : i32
    %0 = arith.muli %arg0, %c1_i32 : i32
    %1 = arith.addi %0, %arg1 : i32
    %c0_i32 = arith.constant 0 : i32
    %2 = arith.minsi %1, %c0_i32 : i32
    %c0_i32_0 = arith.constant 0 : i32
    %c0_i32_1 = arith.constant 0 : i32
    return %2, %c0_i32_0 : i32, i32
  }
  func.func @transform_2(%arg0: i32, %arg1: i32) -> (i32, i32) {
    %c0_i32 = arith.constant 0 : i32
    %c0_i32_0 = arith.constant 0 : i32
    return %arg0, %c0_i32 : i32, i32
  }
}

</mosaic_0001>

<llo_original>
// kernel: tpu_custom_call.1
$region0: #{tpu_custom_call.1}
  #allocation0 [shape = 'u32[]', space=smem, size = 0x4, offset = 0x4, fixed_abs, tag = 'smem constant byte address 0x4 - core index']
  #allocation1 [shape = 'u32[72,128]{1,0:T(1,128)}', space=vmem, size = 0x9000, scoped, tag = 'internal scratch']
  %s0 = inlined_call_operand.vmem [shape: f32[8,10], index: 0, kind: input, shape index: {}]
  %s1 = inlined_call_operand.vmem [shape: s32[8,1], index: 1, kind: input, shape index: {}]
  %s2 = inlined_call_operand.hbm [shape: f32[8,128], index: 2, kind: output, shape index: {}]
  %s3 = sld [smem:[#allocation0]]
  $region22: #{tpu_custom_call.1} parent=0
    _
  %s5 = ssub.s32 1, %s3
  %s6 = scalar_select 0, %s5, %s3
  $region1: #{tpu_custom_call.1} parent=0
    #allocation2 [shape = 'u8[4096]{0}', space=vmem, size = 0x1000, scoped, tag = 'output window, operand 0, single buffered']
    #allocation3 [shape = 's32[1]{0}', space=sflag, size = 0x4, scoped, tag = 'scoped memory for tpu_custom_call.1']
    %7 = vsyncpa [#allocation3], 0
    // Predicated region
    $region2: #{tpu_custom_call.1} parent=1 // pred_check
      _
    $region3: #{tpu_custom_call.1} parent=1 // pred_check_branch
      %9 = sbr.rel (0) target = $region5
    $region4: #{tpu_custom_call.1} parent=1 // pred_region
      %s10 = sadd.s32 0, 0
      %p11 = scmp.lt.s32.totalorder %s10, 0
      %s12 = scalar_select %p11, %s10, 0
      %p13 = scmp.lt.s32.totalorder %s12, 0
      %s14 = scalar_select %p13, %s12, 0
      %s15 = smul.addr %s14, 8
      %s16 = scalar_lea.vmem %s0, %s15
      %s17 = sadd.s32 0, 0
      %p18 = scmp.lt.s32.totalorder %s17, 0
      %s19 = scalar_select %p18, %s17, 0
    $region5: #{tpu_custom_call.1} parent=1 // pred_fallthru
      _
    // Predicated region
    $region6: #{tpu_custom_call.1} parent=1 // pred_check
      _
    $region7: #{tpu_custom_call.1} parent=1 // pred_check_branch
      %21 = sbr.rel (0) target = $region9
    $region8: #{tpu_custom_call.1} parent=1 // pred_region
      %s22 = sadd.s32 0, 0
      %p23 = scmp.lt.s32.totalorder %s22, 0
      %s24 = scalar_select %p23, %s22, 0
      %p25 = scmp.lt.s32.totalorder %s24, 0
      %s26 = scalar_select %p25, %s24, 0
      %s27 = smul.addr %s26, 8
      %s28 = scalar_lea.vmem %s1, %s27
      %s29 = sadd.s32 0, 0
      %p30 = scmp.lt.s32.totalorder %s29, 0
      %s31 = scalar_select %p30, %s29, 0
    $region9: #{tpu_custom_call.1} parent=1 // pred_fallthru
      _
    %s32 = sadd.s32 0, 0
    %p33 = scmp.lt.s32.totalorder %s32, 0
    %s34 = scalar_select %p33, %s32, 0
    %p35 = scmp.lt.s32.totalorder %s34, 0
    %s36 = scalar_select %p35, %s34, 0
    %s37 = smul.addr %s36, 8
    %s38 = scalar_lea.vmem %s0, %s37
    %s39 = sadd.s32 0, 0
    %p40 = scmp.lt.s32.totalorder %s39, 0
    %s41 = scalar_select %p40, %s39, 0
    %p42 = scmp.lt.s32.totalorder %s41, 0
    %s43 = scalar_select %p42, %s41, 0
    %s44 = smul.addr %s43, 8
    %s45 = scalar_lea.vmem %s1, %s44
    %s46 = sadd.s32 0, 0
    %p47 = scmp.lt.s32.totalorder %s46, 0
    %s48 = scalar_select %p47, %s46, 0
    %p49 = scmp.lt.s32.totalorder %s48, 0
    %s50 = scalar_select %p49, %s48, 0
    %s51 = smul.addr %s50, 8
    %s52 = scalar_lea.vmem %s0, %s51
    %s53 = sadd.s32 0, 0
    %p54 = scmp.lt.s32.totalorder %s53, 0
    %s55 = scalar_select %p54, %s53, 0
    %s56 = sadd.s32 0, 0
    %p57 = scmp.lt.s32.totalorder %s56, 0
    %s58 = scalar_select %p57, %s56, 0
    %p59 = scmp.lt.s32.totalorder %s58, 0
    %s60 = scalar_select %p59, %s58, 0
    %s61 = smul.addr %s60, 8
    %s62 = scalar_lea.vmem %s1, %s61
    %s63 = sadd.s32 0, 0
    %p64 = scmp.lt.s32.totalorder %s63, 0
    %s65 = scalar_select %p64, %s63, 0
    %p66 = scmp.eq.s32.totalorder 0, 0
    // Predicated region
    $region10: #{tpu_custom_call.1} parent=1 // pred_check
      %p67 = pneg %p66
    $region11: #{tpu_custom_call.1} parent=1 // pred_check_branch
      %69 = sbr.rel (%p67) target = $region13
    $region12: #{tpu_custom_call.1} parent=1 // pred_region
      %70 = vst [vmem:[#allocation2] sm:$0xff] 0.0
    $region13: #{tpu_custom_call.1} parent=1 // pred_fallthru
      _
    %v71 = vld [vmem:[%s52] sm:$0xff]
    %v72 = vld [vmem:[%s62] sm:$0xff]
    %v73 = vlaneseq
    %v74 = vand.u32 %v73, 127
    %75 = vset.pattern.permute.xlu0 0
    %76 = vperm.xlu0 %75, %v72
    %v77 = vpop.permute.xlu0 %76
    %vm78 = vcmp.eq.s32.totalorder %v74, %v77
    %v79 = vsel %vm78, %v71, 0.0
    %vm80 = vcmask 80896
    %v81 = vsel %vm80, %v79, 0.0
    %82 = vadd.xlane.f32.xlu0 %v81
    %v83 = vpop.xlane.xlu0 %82
    %v84 = vsel %vm78, -1000.0, %v71
    %v85 = vsel %vm80, %v84, -inf
    %86 = vmax.xlane.f32.xlu0 %v85
    %v87 = vpop.xlane.xlu0 %86
    %v88 = vsub.f32 %v83, %v87
    %v89 = vadd.f32 %v88, 50.0
    %v90 = vmax.f32 %v89, 0.0
    %s91 = sadd.s32 0, 0
    %s92 = smul.u32 %s91, 8
    %v93 = vlaneseq
    %v94 = vshrl.u32 %v93, 7
    %v95 = vstv %s92
    %v96 = vadd.s32 %v95, %v94
    %vm97 = vcmp.lt.s32.totalorder %v96, 8
    %v98 = vsel %vm97, %v90, 0.0
    %v99 = vld [vmem:[#allocation2] sm:$0xff]
    %vm100 = vcmask 7168
    %v101 = vsel %vm100, %v98, 0.0
    %102 = vadd.xlane.f32.xlu0 %v101
    %v103 = vpop.xlane.xlu0 %102
    %v104 = vrot.slane %v103, 4
    %v105 = vadd.f32 %v103, %v104
    %v106 = vrot.slane %v105, 2
    %v107 = vadd.f32 %v105, %v106
    %v108 = vrot.slane %v107, 1
    %v109 = vadd.f32 %v107, %v108
    %s110 = vtos %v109
    %v111 = vstv %s110
    %v112 = vsub.f32 %v99, %v111
    %113 = vst [vmem:[#allocation2] sm:$0xff] %v112
    // Predicated region
    $region14: #{tpu_custom_call.1} parent=1 // pred_check
      _
    $region15: #{tpu_custom_call.1} parent=1 // pred_check_branch
      %115 = sbr.rel (0) target = $region17
    $region16: #{tpu_custom_call.1} parent=1 // pred_region
      %117 = vsyncadd [#allocation3], 0
      %s119 = sshll.u32 [#allocation2], 4
      %s120 = int_to_ptr.vmem [resolvable:$true] %s119
      %s121 = sshll.u32 %s2, 4
      %s122 = int_to_ptr.hbm [resolvable:$true] %s121
      %124 = dma.vmem_to_hbm [thread:$0]  %s120, 128, %s122, [#allocation3]
    $region17: #{tpu_custom_call.1} parent=1 // pred_fallthru
      _
    // Predicated region
    $region18: #{tpu_custom_call.1} parent=1 // pred_check
      _
    $region19: #{tpu_custom_call.1} parent=1 // pred_check_branch
      %126 = sbr.rel (0) target = $region21
    $region20: #{tpu_custom_call.1} parent=1 // pred_region
      %128 = dma.done [#allocation3], 128
    $region21: #{tpu_custom_call.1} parent=1 // pred_fallthru
      _
    %129 = vsyncpa [#allocation3], 1

</llo_original>
